<compile_context>
chip_gen: v6e
topology: v6e:2x2x1
jax: 0.10.0
libtpu: 0.0.40
codegen_flags: <defaults>
</compile_context>

<pallas_src>
import math

import jax
import jax.numpy as jnp
from jax import lax
from jax.experimental import pallas as pl
from jax.experimental.pallas import tpu as pltpu

EMBED_SIZE = 384   # embed_size in model.py
HEAD_SIZE = 32
DROPOUT_P = 0.2    # TODO(synk): dropout is eval-mode identity (no RNG); training-mode
                   # stochastic dropout of attention weights is omitted.

_NEG_INF = -1e30   # large finite negative (NaN-safe additive causal bias)


def _head_kernel(x_ref, wqkv_ref, bqkv_ref, o_ref):
    # x_ref: (Bb, T, C); wqkv_ref: (C, 3H) bf16; bqkv_ref: (1, 3H) f32;
    # o_ref: (Bb, T, H).
    Bb, T, C = x_ref.shape
    H = o_ref.shape[-1]

    # Fused QKV projection: one MXU push with M = Bb*T, N = 3H, f32 accumulation.
    x2d = x_ref[...].reshape(Bb * T, C).astype(jnp.bfloat16)
    qkv = jnp.dot(x2d, wqkv_ref[...], preferred_element_type=jnp.float32)
    qkv = (qkv + bqkv_ref[...]).reshape(Bb, T, 3 * H)

    # PyTorch code scales by C**0.5 (embedding size, NOT head size) — kept as-is.
    scale = 1.0 / math.sqrt(C)
    # TODO(synk): 32-lane sub-slices of the 96-lane qkv tile can lower to lane-shift
    # copies; negligible at this size, removed entirely by module-level head fusion.
    q = (qkv[:, :, :H] * scale).astype(jnp.bfloat16)      # scale folded into q
    k = qkv[:, :, H:2 * H].astype(jnp.bfloat16)
    v = qkv[:, :, 2 * H:].astype(jnp.bfloat16)

    # Batched scores (Bb, T, T): contract last dims of q/k, no explicit transpose.
    wei = jnp.einsum('bqd,bkd->bqk', q, k, preferred_element_type=jnp.float32)

    # Causal mask generated in-kernel (VPU work, hides under MXU/DMA critical path).
    row = lax.broadcasted_iota(jnp.int32, (T, T), 0)
    col = lax.broadcasted_iota(jnp.int32, (T, T), 1)
    wei = wei + jnp.where(col <= row, 0.0, _NEG_INF)[None, :, :]

    # Softmax in f32, normalization deferred past the PV matmul.
    m = jnp.max(wei, axis=-1, keepdims=True)
    e = jnp.exp(wei - m)
    # TODO(synk): on v6e/v7x, casting (wei - m) to bf16 before exp ~doubles EUP
    # throughput if the kernel is EUP-bound at large T (not valid on v5e).
    s = jnp.sum(e, axis=-1, keepdims=True)

    out = jnp.einsum('bqk,bkd->bqd', e.astype(jnp.bfloat16), v,
                     preferred_element_type=jnp.float32)
    out = out * pl.reciprocal(s, approx=True)   # EUP vrcp over (T,1), not a (T,T) divide
    o_ref[...] = out.astype(o_ref.dtype)


def _per_step_vmem_bytes(Bb, T, C, H, x_itemsize):
    """Rough per-grid-step VMEM footprint for the kernel above."""
    x_bytes = 2 * Bb * T * C * x_itemsize        # double-buffered input block
    w_bytes = C * 3 * H * 2 + 3 * H * 4          # fused weight (bf16) + bias (f32)
    qkv_bytes = Bb * T * 3 * H * 4               # f32 QKV intermediate
    wei_bytes = 2 * Bb * T * T * 4               # wei + e (f32 scores)
    out_bytes = 2 * Bb * T * H * 4               # double-buffered output block
    return x_bytes + w_bytes + qkv_bytes + wei_bytes + out_bytes


def _choose_batch_block(B, T, C, H, x_itemsize,
                        *, vmem_budget=24 << 20, target_m=256):
    """Pick Bb | B: maximize Bb (MXU row fill, fewest grid steps) under the VMEM
    budget; only allow a >=2-step split (v7x megacore) when Bb*T stays >= target_m."""
    divisors = [d for d in range(1, B + 1) if B % d == 0]
    fitting = [d for d in divisors
               if _per_step_vmem_bytes(d, T, C, H, x_itemsize) <= vmem_budget]
    if not fitting:
        return 1
    bb = max(fitting)
    if B // bb == 1:
        # Optional split across 2 TensorCores — never at the cost of MXU row fill.
        splittable = [d for d in fitting if B // d >= 2 and d * T >= target_m]
        if splittable:
            bb = max(splittable)
    return bb


def head_forward(x, wq, wk, wv, bq, bk, bv):
    """x: (B, T, C). Weights (C, H), biases (1, H). Returns (B, T, H)."""
    B, T, C = x.shape
    H = wq.shape[1]
    x_itemsize = jnp.dtype(x.dtype).itemsize

    # Fuse the three projections into one (C, 3H) weight; bf16 MXU operand.
    wqkv = jnp.concatenate([wq, wk, wv], axis=1).astype(jnp.bfloat16)   # (C, 3H)
    bqkv = jnp.concatenate([bq, bk, bv], axis=1).astype(jnp.float32)    # (1, 3H)

    Bb = _choose_batch_block(B, T, C, H, x_itemsize)
    footprint = _per_step_vmem_bytes(Bb, T, C, H, x_itemsize)
    vmem_limit = int(min(48 << 20, max(2 * footprint, 16 << 20)))

    grid_spec = pltpu.PrefetchScalarGridSpec(
        num_scalar_prefetch=0,
        grid=(B // Bb,),
        in_specs=[
            pl.BlockSpec((Bb, T, C), lambda b: (b, 0, 0)),      # x
            pl.BlockSpec((C, 3 * H), lambda b: (0, 0)),         # fused Wqkv (grid-invariant)
            pl.BlockSpec((1, 3 * H), lambda b: (0, 0)),         # fused bias
        ],
        out_specs=pl.BlockSpec((Bb, T, H), lambda b: (b, 0, 0)),
    )

    cost = pl.CostEstimate(
        flops=2 * B * T * C * (3 * H) + 2 * (2 * B * T * T * H),
        transcendentals=B * T * T,
        bytes_accessed=(x.size * x_itemsize + wqkv.size * 2 + bqkv.size * 4
                        + B * T * H * x_itemsize),
    )

    return pl.pallas_call(
        _head_kernel,
        out_shape=jax.ShapeDtypeStruct((B, T, H), x.dtype),
        grid_spec=grid_spec,
        compiler_params=pltpu.CompilerParams(
            dimension_semantics=("parallel",),
            vmem_limit_bytes=vmem_limit),
        cost_estimate=cost,
    )(x, wqkv, bqkv)


def _reference(x, wq, wk, wv, bq, bk, bv):
    """Plain-JAX f32 reference mirroring the PyTorch forward (eval-mode dropout)."""
    B, T, C = x.shape
    q = x @ wq + bq
    k = x @ wk + bk
    v = x @ wv + bv
    wei = (q @ jnp.swapaxes(k, -2, -1)) / (C ** 0.5)
    mask = jnp.tril(jnp.ones((T, T), dtype=bool))
    wei = jnp.where(mask, wei, -jnp.inf)
    wei = jax.nn.softmax(wei, axis=-1)
    return wei @ v


if __name__ == "__main__":
    key = jax.random.PRNGKey(0)
    kx, kq, kk, kv, kbq, kbk, kbv = jax.random.split(key, 7)

    B, T, C, H = 2, 8, EMBED_SIZE, HEAD_SIZE

    x = jax.random.normal(kx, (B, T, C), dtype=jnp.float32)

    # Deterministic parameter init (uniform, roughly like nn.Linear's default).
    bound = 1.0 / math.sqrt(C)
    wq = jax.random.uniform(kq, (C, H), jnp.float32, -bound, bound)
    wk = jax.random.uniform(kk, (C, H), jnp.float32, -bound, bound)
    wv = jax.random.uniform(kv, (C, H), jnp.float32, -bound, bound)
    bq = jax.random.uniform(kbq, (1, H), jnp.float32, -bound, bound)
    bk = jax.random.uniform(kbk, (1, H), jnp.float32, -bound, bound)
    bv = jax.random.uniform(kbv, (1, H), jnp.float32, -bound, bound)

    out = head_forward(x, wq, wk, wv, bq, bk, bv)
    out = jax.block_until_ready(out)

    ref = _reference(x, wq, wk, wv, bq, bk, bv)
    assert out.shape == (B, T, H)
    # bf16 MXU operands (f32 accumulation) + approx reciprocal -> small drift vs f32 ref.
    err = float(jnp.max(jnp.abs(out - ref)))
    assert jnp.allclose(out, ref, atol=5e-2, rtol=5e-2), f"max abs err {err}"

    print("KERNEL_OK")
</pallas_src>

<mosaic_0001>
module attributes {stable_mosaic.version = 11 : i64} {
  func.func @_head_kernel(%arg0: i32, %arg1: memref<2x8x384xf32, #tpu.memory_space<vmem>>, %arg2: memref<384x96xbf16, #tpu.memory_space<vmem>>, %arg3: memref<1x96xf32, #tpu.memory_space<vmem>>, %arg4: memref<2x8x32xf32, #tpu.memory_space<vmem>>) attributes {dimension_semantics = [#tpu.dimension_semantics<parallel>], iteration_bounds = array<i64: 1>, scalar_prefetch = 0 : i64, scratch_operands = 0 : i64, tpu.core_type = #tpu.core_type<tc>, window_params = [{transform_indices = @transform_0, window_bounds = array<i64: 2, 8, 384>}, {pipeline_mode = #tpu.pipeline_mode<synchronous>, transform_indices = @transform_1, window_bounds = array<i64: 384, 96>}, {pipeline_mode = #tpu.pipeline_mode<synchronous>, transform_indices = @transform_2, window_bounds = array<i64: 1, 96>}, {transform_indices = @transform_3, window_bounds = array<i64: 2, 8, 32>}]} {
    %c0 = arith.constant 0 : index
    %c0_0 = arith.constant 0 : index
    %c0_1 = arith.constant 0 : index
    %0 = vector.load %arg1[%c0, %c0_0, %c0_1] : memref<2x8x384xf32, #tpu.memory_space<vmem>>, vector<2x8x384xf32>
    %1 = vector.shape_cast %0 : vector<2x8x384xf32> to vector<16x384xf32>
    %2 = arith.truncf %1 : vector<16x384xf32> to vector<16x384xbf16>
    %c0_2 = arith.constant 0 : index
    %c0_3 = arith.constant 0 : index
    %3 = vector.load %arg2[%c0_2, %c0_3] : memref<384x96xbf16, #tpu.memory_space<vmem>>, vector<384x96xbf16>
    %cst = arith.constant dense<0.000000e+00> : vector<16x96xf32>
    %4 = tpu.matmul %2, %3, %cst {dimension_numbers = #tpu.dot_dimension_numbers<[1], [0], [0], [1], [0, 0, 1, 1], [], []>} : vector<16x384xbf16>, vector<384x96xbf16>, vector<16x96xf32> -> vector<16x96xf32>
    %c0_4 = arith.constant 0 : index
    %c0_5 = arith.constant 0 : index
    %5 = vector.load %arg3[%c0_4, %c0_5] : memref<1x96xf32, #tpu.memory_space<vmem>>, vector<1x96xf32>
    %6 = vector.broadcast %5 : vector<1x96xf32> to vector<16x96xf32>
    %7 = arith.addf %4, %6 : vector<16x96xf32>
    %8 = vector.shape_cast %7 : vector<16x96xf32> to vector<2x8x96xf32>
    %9 = vector.extract_strided_slice %8 {offsets = [0, 0, 0], sizes = [2, 8, 32], strides = [1, 1, 1]} : vector<2x8x96xf32> to vector<2x8x32xf32>
    %cst_6 = arith.constant 0.0510310382 : f32
    %10 = vector.broadcast %cst_6 : f32 to vector<2x8x32xf32>
    %11 = arith.mulf %9, %10 : vector<2x8x32xf32>
    %12 = arith.truncf %11 : vector<2x8x32xf32> to vector<2x8x32xbf16>
    %13 = vector.extract_strided_slice %8 {offsets = [0, 0, 32], sizes = [2, 8, 32], strides = [1, 1, 1]} : vector<2x8x96xf32> to vector<2x8x32xf32>
    %14 = arith.truncf %13 : vector<2x8x32xf32> to vector<2x8x32xbf16>
    %15 = vector.extract_strided_slice %8 {offsets = [0, 0, 64], sizes = [2, 8, 32], strides = [1, 1, 1]} : vector<2x8x96xf32> to vector<2x8x32xf32>
    %16 = arith.truncf %15 : vector<2x8x32xf32> to vector<2x8x32xbf16>
    "tpu.trace_start"() <{level = 10 : i32, message = "bqd,bkd->bqk"}> : () -> ()
    %cst_7 = arith.constant dense<0.000000e+00> : vector<2x8x8xf32>
    %17 = tpu.matmul %12, %14, %cst_7 {dimension_numbers = #tpu.dot_dimension_numbers<[2], [2], [1], [1], [0, 0, 0, 1, 1, 1], [0], [0]>} : vector<2x8x32xbf16>, vector<2x8x32xbf16>, vector<2x8x8xf32> -> vector<2x8x8xf32>
    "tpu.trace_stop"() : () -> ()
    %18 = tpu.iota {dimensions = array<i32: 0>} : vector<8x8xi32>
    %19 = tpu.iota {dimensions = array<i32: 1>} : vector<8x8xi32>
    %20 = arith.cmpi sle, %19, %18 : vector<8x8xi32>
    %cst_8 = arith.constant 0.000000e+00 : f32
    %cst_9 = arith.constant -1.000000e+30 : f32
    %21 = vector.broadcast %cst_8 : f32 to vector<8x8xf32>
    %22 = vector.broadcast %cst_9 : f32 to vector<8x8xf32>
    %23 = arith.select %20, %21, %22 : vector<8x8xi1>, vector<8x8xf32>
    %24 = vector.shape_cast %23 : vector<8x8xf32> to vector<1x8x8xf32>
    %25 = vector.broadcast %24 : vector<1x8x8xf32> to vector<2x8x8xf32>
    %26 = arith.addf %17, %25 : vector<2x8x8xf32>
    %cst_10 = arith.constant dense<0xFF800000> : vector<2x8xf32>
    %27 = vector.multi_reduction <maximumf>, %26, %cst_10 [2] : vector<2x8x8xf32> to vector<2x8xf32>
    %28 = vector.shape_cast %27 : vector<2x8xf32> to vector<2x8x1xf32>
    %29 = vector.broadcast %28 : vector<2x8x1xf32> to vector<2x8x8xf32>
    %30 = arith.subf %26, %29 : vector<2x8x8xf32>
    %31 = math.exp %30 : vector<2x8x8xf32>
    %cst_11 = arith.constant dense<0.000000e+00> : vector<2x8xf32>
    %32 = vector.multi_reduction <add>, %31, %cst_11 [2] : vector<2x8x8xf32> to vector<2x8xf32>
    %33 = vector.shape_cast %32 : vector<2x8xf32> to vector<2x8x1xf32>
    %34 = arith.truncf %31 : vector<2x8x8xf32> to vector<2x8x8xbf16>
    "tpu.trace_start"() <{level = 10 : i32, message = "bqk,bkd->bqd"}> : () -> ()
    %cst_12 = arith.constant dense<0.000000e+00> : vector<2x8x32xf32>
    %35 = tpu.matmul %34, %16, %cst_12 {dimension_numbers = #tpu.dot_dimension_numbers<[2], [1], [1], [2], [0, 0, 0, 1, 1, 2], [0], [0]>} : vector<2x8x8xbf16>, vector<2x8x32xbf16>, vector<2x8x32xf32> -> vector<2x8x32xf32>
    "tpu.trace_stop"() : () -> ()
    %36 = tpu.reciprocal %33 {approx = true} : vector<2x8x1xf32> -> vector<2x8x1xf32>
    %37 = vector.broadcast %36 : vector<2x8x1xf32> to vector<2x8x32xf32>
    %38 = arith.mulf %35, %37 : vector<2x8x32xf32>
    %c0_13 = arith.constant 0 : index
    %c0_14 = arith.constant 0 : index
    %c0_15 = arith.constant 0 : index
    %39 = vector.load %arg4[%c0_13, %c0_14, %c0_15] : memref<2x8x32xf32, #tpu.memory_space<vmem>>, vector<2x8x32xf32>
    tpu.vector_store %arg4[%c0_13, %c0_14, %c0_15], %38 {strides = array<i32>} : memref<2x8x32xf32, #tpu.memory_space<vmem>>, vector<2x8x32xf32>,
    return
  }
  func.func @transform_0(%arg0: i32) -> (i32, i32, i32) {
    %c0_i32 = arith.constant 0 : i32
    %c0_i32_0 = arith.constant 0 : i32
    %c0_i32_1 = arith.constant 0 : i32
    return %arg0, %c0_i32, %c0_i32_0 : i32, i32, i32
  }
  func.func @transform_1(%arg0: i32) -> (i32, i32) {
    %c0_i32 = arith.constant 0 : i32
    %c0_i32_0 = arith.constant 0 : i32
    %c0_i32_1 = arith.constant 0 : i32
    return %c0_i32, %c0_i32_0 : i32, i32
  }
  func.func @transform_2(%arg0: i32) -> (i32, i32) {
    %c0_i32 = arith.constant 0 : i32
    %c0_i32_0 = arith.constant 0 : i32
    %c0_i32_1 = arith.constant 0 : i32
    return %c0_i32, %c0_i32_0 : i32, i32
  }
  func.func @transform_3(%arg0: i32) -> (i32, i32, i32) {
    %c0_i32 = arith.constant 0 : i32
    %c0_i32_0 = arith.constant 0 : i32
    %c0_i32_1 = arith.constant 0 : i32
    return %arg0, %c0_i32, %c0_i32_0 : i32, i32, i32
  }
}

</mosaic_0001>

<llo_original>
// kernel: tpu_custom_call.1
$region0: #{tpu_custom_call.1}
  #allocation0 [shape = 'u32[]', space=smem, size = 0x4, offset = 0x4, fixed_abs, tag = 'smem constant byte address 0x4 - core index']
  #allocation1 [shape = 'u32[144,128]{1,0:T(1,128)}', space=vmem, size = 0x12000, scoped, tag = 'internal scratch']
  %s0 = inlined_call_operand.vmem [shape: f32[2,8,384], index: 0, kind: input, shape index: {}]
  %s1 = inlined_call_operand.vmem [shape: bf16[384,96], index: 1, kind: input, shape index: {}]
  %s2 = inlined_call_operand.vmem [shape: f32[1,96], index: 2, kind: input, shape index: {}]
  %s3 = inlined_call_operand.hbm [shape: f32[2,8,32], index: 3, kind: output, shape index: {}]
  %s4 = sld [smem:[#allocation0]]
  $region22: #{tpu_custom_call.1} parent=0
    _
  %s6 = ssub.s32 1, %s4
  %s7 = scalar_select 0, %s6, %s4
  $region1: #{tpu_custom_call.1} parent=0
    #allocation2 [shape = 'u8[8192]{0}', space=vmem, size = 0x2000, scoped, tag = 'output window, operand 0, single buffered']
    #allocation3 [shape = 's32[1]{0}', space=sflag, size = 0x4, scoped, tag = 'scoped memory for tpu_custom_call.1']
    %8 = vsyncpa [#allocation3], 0
    // Predicated region
    $region2: #{tpu_custom_call.1} parent=1 // pred_check
      _
    $region3: #{tpu_custom_call.1} parent=1 // pred_check_branch
      %10 = sbr.rel (0) target = $region5
    $region4: #{tpu_custom_call.1} parent=1 // pred_region
      _
    $region5: #{tpu_custom_call.1} parent=1 // pred_fallthru
      _
    // Predicated region
    $region6: #{tpu_custom_call.1} parent=1 // pred_check
      _
    $region7: #{tpu_custom_call.1} parent=1 // pred_check_branch
      %12 = sbr.rel (0) target = $region9
    $region8: #{tpu_custom_call.1} parent=1 // pred_region
      _
    $region9: #{tpu_custom_call.1} parent=1 // pred_fallthru
      _
    // Predicated region
    $region10: #{tpu_custom_call.1} parent=1 // pred_check
      _
    $region11: #{tpu_custom_call.1} parent=1 // pred_check_branch
      %14 = sbr.rel (0) target = $region13
    $region12: #{tpu_custom_call.1} parent=1 // pred_region
      _
    $region13: #{tpu_custom_call.1} parent=1 // pred_fallthru
      _
    %v16 = vld [vmem:[%s0] sm:$0xff]
    %v17 = vld [vmem:[%s0 + $0x8] sm:$0xff]
    %v18 = vld [vmem:[%s0 + $0x10] sm:$0xff]
    %v19 = vld [vmem:[%s0 + $0x18] sm:$0xff]
    %v20 = vld [vmem:[%s0 + $0x20] sm:$0xff]
    %v21 = vld [vmem:[%s0 + $0x28] sm:$0xff]
    %v22 = vpack.c.bf16 %v19, %v16
    %v23 = vpack.c.bf16 %v20, %v17
    %v24 = vpack.c.bf16 %v21, %v18
    %v25 = vld [vmem:[%s1] sm:$0xf]
    %v26 = vld [vmem:[%s1 + $0x4] sm:$0xf]
    %v27 = vld [vmem:[%s1 + $0x8] sm:$0xf]
    %v28 = vld [vmem:[%s1 + $0xc] sm:$0xf]
    %v29 = vld [vmem:[%s1 + $0x10] sm:$0xf]
    %v30 = vld [vmem:[%s1 + $0x14] sm:$0xf]
    %v31 = vld [vmem:[%s1 + $0x18] sm:$0xf]
    %v32 = vld [vmem:[%s1 + $0x1c] sm:$0xf]
    %v33 = vld [vmem:[%s1 + $0x20] sm:$0xf]
    %v34 = vld [vmem:[%s1 + $0x24] sm:$0xf]
    %v35 = vld [vmem:[%s1 + $0x28] sm:$0xf]
    %v36 = vld [vmem:[%s1 + $0x2c] sm:$0xf]
    %v37 = vld [vmem:[%s1 + $0x30] sm:$0xf]
    %v38 = vld [vmem:[%s1 + $0x34] sm:$0xf]
    %v39 = vld [vmem:[%s1 + $0x38] sm:$0xf]
    %v40 = vld [vmem:[%s1 + $0x3c] sm:$0xf]
    %v41 = vld [vmem:[%s1 + $0x40] sm:$0xf]
    %v42 = vld [vmem:[%s1 + $0x44] sm:$0xf]
    %v43 = vld [vmem:[%s1 + $0x48] sm:$0xf]
    %v44 = vld [vmem:[%s1 + $0x4c] sm:$0xf]
    %v45 = vld [vmem:[%s1 + $0x50] sm:$0xf]
    %v46 = vld [vmem:[%s1 + $0x54] sm:$0xf]
    %v47 = vld [vmem:[%s1 + $0x58] sm:$0xf]
    %v48 = vld [vmem:[%s1 + $0x5c] sm:$0xf]
    %v49 = vld [vmem:[%s1 + $0x60] sm:$0xf]
    %v50 = vld [vmem:[%s1 + $0x64] sm:$0xf]
    %v51 = vld [vmem:[%s1 + $0x68] sm:$0xf]
    %v52 = vld [vmem:[%s1 + $0x6c] sm:$0xf]
    %v53 = vld [vmem:[%s1 + $0x70] sm:$0xf]
    %v54 = vld [vmem:[%s1 + $0x74] sm:$0xf]
    %v55 = vld [vmem:[%s1 + $0x78] sm:$0xf]
    %v56 = vld [vmem:[%s1 + $0x7c] sm:$0xf]
    %v57 = vld [vmem:[%s1 + $0x80] sm:$0xf]
    %v58 = vld [vmem:[%s1 + $0x84] sm:$0xf]
    %v59 = vld [vmem:[%s1 + $0x88] sm:$0xf]
    %v60 = vld [vmem:[%s1 + $0x8c] sm:$0xf]
    %v61 = vld [vmem:[%s1 + $0x90] sm:$0xf]
    %v62 = vld [vmem:[%s1 + $0x94] sm:$0xf]
    %v63 = vld [vmem:[%s1 + $0x98] sm:$0xf]
    %v64 = vld [vmem:[%s1 + $0x9c] sm:$0xf]
    %v65 = vld [vmem:[%s1 + $0xa0] sm:$0xf]
    %v66 = vld [vmem:[%s1 + $0xa4] sm:$0xf]
    %v67 = vld [vmem:[%s1 + $0xa8] sm:$0xf]
    %v68 = vld [vmem:[%s1 + $0xac] sm:$0xf]
    %v69 = vld [vmem:[%s1 + $0xb0] sm:$0xf]
    %v70 = vld [vmem:[%s1 + $0xb4] sm:$0xf]
    %v71 = vld [vmem:[%s1 + $0xb8] sm:$0xf]
    %v72 = vld [vmem:[%s1 + $0xbc] sm:$0xf]
    %v73 = vld [vmem:[%s2] sm:$0x1]
    %v75 = vlaneseq
    %v76 = vshrl.u32 %v75, 7
    %v77 = vsub.s32 0, %v76
    %v78 = vrot.slane %v73, %v77
    %v128 = vunpack.c.l.b16 %v25
    %v129 = vunpack.c.l.b16 %v26
    %v130 = vunpack.c.l.b16 %v27
    %v131 = vunpack.c.l.b16 %v28
    %v132 = vunpack.c.l.b16 %v29
    %v133 = vunpack.c.l.b16 %v30
    %v134 = vunpack.c.l.b16 %v31
    %v135 = vunpack.c.l.b16 %v32
    %v136 = vunpack.c.l.b16 %v33
    %v137 = vunpack.c.l.b16 %v34
    %v138 = vunpack.c.l.b16 %v35
    %v139 = vunpack.c.l.b16 %v36
    %v140 = vunpack.c.l.b16 %v37
    %v141 = vunpack.c.l.b16 %v38
    %v142 = vunpack.c.l.b16 %v39
    %v143 = vunpack.c.l.b16 %v40
    %v144 = vunpack.c.l.b16 %v41
    %v145 = vunpack.c.l.b16 %v42
    %v146 = vunpack.c.l.b16 %v43
    %v147 = vunpack.c.l.b16 %v44
    %v148 = vunpack.c.l.b16 %v45
    %v149 = vunpack.c.l.b16 %v46
    %v150 = vunpack.c.l.b16 %v47
    %v151 = vunpack.c.l.b16 %v48
    %v152 = vunpack.c.l.b16 %v49
    %v153 = vunpack.c.l.b16 %v50
    %v154 = vunpack.c.l.b16 %v51
    %v155 = vunpack.c.l.b16 %v52
    %v156 = vunpack.c.l.b16 %v53
    %v157 = vunpack.c.l.b16 %v54
    %v158 = vunpack.c.l.b16 %v55
    %v159 = vunpack.c.l.b16 %v56
    %v160 = vunpack.c.l.b16 %v57
    %v161 = vunpack.c.l.b16 %v58
    %v162 = vunpack.c.l.b16 %v59
    %v163 = vunpack.c.l.b16 %v60
    %v164 = vunpack.c.l.b16 %v61
    %v165 = vunpack.c.l.b16 %v62
    %v166 = vunpack.c.l.b16 %v63
    %v167 = vunpack.c.l.b16 %v64
    %v168 = vunpack.c.l.b16 %v65
    %v169 = vunpack.c.l.b16 %v66
    %v170 = vunpack.c.l.b16 %v67
    %v171 = vunpack.c.l.b16 %v68
    %v172 = vunpack.c.l.b16 %v69
    %v173 = vunpack.c.l.b16 %v70
    %v174 = vunpack.c.l.b16 %v71
    %v175 = vunpack.c.l.b16 %v72
    %v176 = vpack.c.b16 %v129, %v128
    %v177 = vpack.c.b16 %v131, %v130
    %v178 = vpack.c.b16 %v133, %v132
    %v179 = vpack.c.b16 %v135, %v134
    %v180 = vpack.c.b16 %v137, %v136
    %v181 = vpack.c.b16 %v139, %v138
    %v182 = vpack.c.b16 %v141, %v140
    %v183 = vpack.c.b16 %v143, %v142
    %v184 = vpack.c.b16 %v145, %v144
    %v185 = vpack.c.b16 %v147, %v146
    %v186 = vpack.c.b16 %v149, %v148
    %v187 = vpack.c.b16 %v151, %v150
    %v188 = vpack.c.b16 %v153, %v152
    %v189 = vpack.c.b16 %v155, %v154
    %v190 = vpack.c.b16 %v157, %v156
    %v191 = vpack.c.b16 %v159, %v158
    %v192 = vpack.c.b16 %v161, %v160
    %v193 = vpack.c.b16 %v163, %v162
    %v194 = vpack.c.b16 %v165, %v164
    %v195 = vpack.c.b16 %v167, %v166
    %v196 = vpack.c.b16 %v169, %v168
    %v197 = vpack.c.b16 %v171, %v170
    %v198 = vpack.c.b16 %v173, %v172
    %v199 = vpack.c.b16 %v175, %v174
    %224 = vmatprep.subr.bf16.mxu0 0
    %225 = vmatpush1.bf16.msra.mxu0 %v183
    %226 = vmatprep.subr.bf16.mxu0 0
    %227 = vmatpush1.bf16.msra.mxu0 %v182
    %228 = vmatprep.subr.bf16.mxu0 0
    %229 = vmatpush1.bf16.msra.mxu0 %v181
    %230 = vmatprep.subr.bf16.mxu0 0
    %231 = vmatpush1.bf16.msra.mxu0 %v180
    %232 = vmatprep.subr.bf16.mxu0 0
    %233 = vmatpush1.bf16.msra.mxu0 %v179
    %234 = vmatprep.subr.bf16.mxu0 0
    %235 = vmatpush1.bf16.msra.mxu0 %v178
    %236 = vmatprep.subr.bf16.mxu0 0
    %237 = vmatpush1.bf16.msra.mxu0 %v177
    %238 = vmatprep.subr.bf16.mxu0 0
    %239 = vmatpush1.bf16.msra.mxu0 %v176
    %240 = vmatprep.subr.bf16.mxu0 0
    %241 = vmatpush2.bf16.msra.mxu0 %v191
    %242 = vmatprep.subr.bf16.mxu0 0
    %243 = vmatpush2.bf16.msra.mxu0 %v190
    %244 = vmatprep.subr.bf16.mxu0 0
    %245 = vmatpush2.bf16.msra.mxu0 %v189
    %246 = vmatprep.subr.bf16.mxu0 0
    %247 = vmatpush2.bf16.msra.mxu0 %v188
    %248 = vmatprep.subr.bf16.mxu0 0
    %249 = vmatpush2.bf16.msra.mxu0 %v187
    %250 = vmatprep.subr.bf16.mxu0 0
    %251 = vmatpush2.bf16.msra.mxu0 %v186
    %252 = vmatprep.subr.bf16.mxu0 0
    %253 = vmatpush2.bf16.msra.mxu0 %v185
    %254 = vmatprep.subr.bf16.mxu0 0
    %255 = vmatpush2.bf16.msra.mxu0 %v184
    %256 = vmatprep.mubr.bf16.mxu0 %v23
    %257 = vmatmul.mubr.bf16.gmra.mxu0 %v22
    %v258 = vpop.f32.mrf.mxu0
    %v259 = vadd.f32 %v78, %v258
    %v260 = vpop.f32.mrf.mxu0
    %v261 = vpop.f32.mrf.mxu0
    %v262 = vadd.f32 %v78, %v261
    %v263 = vpop.f32.mrf.mxu0
    %264 = vdwg.mxu0
    %265 = vmatprep.subr.bf16.mxu0 0
    %266 = vmatpush1.bf16.msra.mxu0 %v199
    %267 = vmatprep.subr.bf16.mxu0 0
    %268 = vmatpush1.bf16.msra.mxu0 %v198
    %269 = vmatprep.subr.bf16.mxu0 0
    %270 = vmatpush1.bf16.msra.mxu0 %v197
    %271 = vmatprep.subr.bf16.mxu0 0
    %272 = vmatpush1.bf16.msra.mxu0 %v196
    %273 = vmatprep.subr.bf16.mxu0 0
    %274 = vmatpush1.bf16.msra.mxu0 %v195
    %275 = vmatprep.subr.bf16.mxu0 0
    %276 = vmatpush1.bf16.msra.mxu0 %v194
    %277 = vmatprep.subr.bf16.mxu0 0
    %278 = vmatpush1.bf16.msra.mxu0 %v193
    %279 = vmatprep.subr.bf16.mxu0 0
    %280 = vmatpush1.bf16.msra.mxu0 %v192
    %281 = vmatprep.subr.bf16.mxu0 0
    %282 = vmatpush2.bf16.msra.mxu0 0
    %283 = vmatprep.subr.bf16.mxu0 0
    %284 = vmatpush2.bf16.msra.mxu0 0
    %285 = vmatprep.subr.bf16.mxu0 0
    %286 = vmatpush2.bf16.msra.mxu0 0
    %287 = vmatprep.subr.bf16.mxu0 0
    %288 = vmatpush2.bf16.msra.mxu0 0
    %289 = vmatprep.subr.bf16.mxu0 0
    %290 = vmatpush2.bf16.msra.mxu0 0
    %291 = vmatprep.subr.bf16.mxu0 0
    %292 = vmatpush2.bf16.msra.mxu0 0
    %293 = vmatprep.subr.bf16.mxu0 0
    %294 = vmatpush2.bf16.msra.mxu0 0
    %295 = vmatprep.subr.bf16.mxu0 0
    %296 = vmatpush2.bf16.msra.mxu0 0
    %297 = vmatprep.mubr.bf16.mxu0 0
    %298 = vmatmul.mubr.bf16.gmra.mxu0 %v24
    %v299 = vpop.f32.mrf.mxu0
    %v300 = vadd.f32 %v259, %v299
    %v301 = vpop.f32.mrf.mxu0
    %v302 = vpop.f32.mrf.mxu0
    %v303 = vadd.f32 %v262, %v302
    %v304 = vpop.f32.mrf.mxu0
    %305 = vdwg.mxu0
    %v306 = vmul.f32 %v300, 0.05103104
    %v307 = vmul.f32 %v303, 0.05103104
    %v308 = vpack.c.bf16 %v306, %v306
    %v309 = vpack.c.bf16 %v307, %v307
    %v310 = vpack.c.bf16 %v300, %v300
    %v311 = vpack.c.bf16 %v303, %v303
    %v312 = vlaneseq
    %v313 = vshrl.u32 %v312, 7
    %v314 = vlaneseq
    %v315 = vand.u32 %v314, 127
    %vm316 = vcmp.le.s32.totalorder %v315, %v313
    %v317 = vsel %vm316, 0.0, -1e+30
    %319 = vrot.lane.b32.xlu0 %v310, 96
    %v320 = vpop.permute.xlu0 %319
    %vm321 = vcmask 261120
    %v323 = vsel %vm321, %v308, 0
    %v326 = vsel %vm321, %v320, 0
    %328 = vmatprep.subr.bf16.mxu0 0
    %329 = vmatpush1.bf16.xpose.msra.mxu0 0
    %330 = vmatprep.subr.bf16.mxu0 0
    %331 = vmatpush1.bf16.xpose.msra.mxu0 0
    %332 = vmatprep.subr.bf16.mxu0 0
    %333 = vmatpush1.bf16.xpose.msra.mxu0 0
    %334 = vmatprep.subr.bf16.mxu0 0
    %335 = vmatpush1.bf16.xpose.msra.mxu0 0
    %336 = vmatprep.subr.bf16.mxu0 0
    %337 = vmatpush1.bf16.xpose.msra.mxu0 0
    %338 = vmatprep.subr.bf16.mxu0 0
    %339 = vmatpush1.bf16.xpose.msra.mxu0 0
    %340 = vmatprep.subr.bf16.mxu0 0
    %341 = vmatpush1.bf16.xpose.msra.mxu0 0
    %342 = vmatprep.subr.bf16.mxu0 0
    %343 = vmatpush1.bf16.xpose.msra.mxu0 %v326
    %344 = vmatprep.subr.bf16.mxu0 0
    %345 = vmatpush2.bf16.xpose.msra.mxu0 0
    %346 = vmatprep.subr.bf16.mxu0 0
    %347 = vmatpush2.bf16.xpose.msra.mxu0 0
    %348 = vmatprep.subr.bf16.mxu0 0
    %349 = vmatpush2.bf16.xpose.msra.mxu0 0
    %350 = vmatprep.subr.bf16.mxu0 0
    %351 = vmatpush2.bf16.xpose.msra.mxu0 0
    %352 = vmatprep.subr.bf16.mxu0 0
    %353 = vmatpush2.bf16.xpose.msra.mxu0 0
    %354 = vmatprep.subr.bf16.mxu0 0
    %355 = vmatpush2.bf16.xpose.msra.mxu0 0
    %356 = vmatprep.subr.bf16.mxu0 0
    %357 = vmatpush2.bf16.xpose.msra.mxu0 0
    %358 = vmatprep.subr.bf16.mxu0 0
    %359 = vmatpush2.bf16.xpose.msra.mxu0 0
    %360 = vmatprep.mubr.bf16.mxu0 0
    %361 = vmatmul.mubr.bf16.gmra.mxu0 %v323
    %v362 = vpop.f32.mrf.mxu0
    %v363 = vadd.f32 %v317, %v362
    %v364 = vpop.f32.mrf.mxu0
    %v365 = vpop.f32.mrf.mxu0
    %v366 = vpop.f32.mrf.mxu0
    %367 = vdwg.mxu0
    %369 = vrot.lane.b32.xlu0 %v311, 96
    %v370 = vpop.permute.xlu0 %369
    %v372 = vsel %vm321, %v309, 0
    %v375 = vsel %vm321, %v370, 0
    %377 = vmatprep.subr.bf16.mxu0 0
    %378 = vmatpush1.bf16.xpose.msra.mxu0 0
    %379 = vmatprep.subr.bf16.mxu0 0
    %380 = vmatpush1.bf16.xpose.msra.mxu0 0
    %381 = vmatprep.subr.bf16.mxu0 0
    %382 = vmatpush1.bf16.xpose.msra.mxu0 0
    %383 = vmatprep.subr.bf16.mxu0 0
    %384 = vmatpush1.bf16.xpose.msra.mxu0 0
    %385 = vmatprep.subr.bf16.mxu0 0
    %386 = vmatpush1.bf16.xpose.msra.mxu0 0
    %387 = vmatprep.subr.bf16.mxu0 0
    %388 = vmatpush1.bf16.xpose.msra.mxu0 0
    %389 = vmatprep.subr.bf16.mxu0 0
    %390 = vmatpush1.bf16.xpose.msra.mxu0 0
    %391 = vmatprep.subr.bf16.mxu0 0
    %392 = vmatpush1.bf16.xpose.msra.mxu0 %v375
    %393 = vmatprep.subr.bf16.mxu0 0
    %394 = vmatpush2.bf16.xpose.msra.mxu0 0
    %395 = vmatprep.subr.bf16.mxu0 0
    %396 = vmatpush2.bf16.xpose.msra.mxu0 0
    %397 = vmatprep.subr.bf16.mxu0 0
    %398 = vmatpush2.bf16.xpose.msra.mxu0 0
    %399 = vmatprep.subr.bf16.mxu0 0
    %400 = vmatpush2.bf16.xpose.msra.mxu0 0
    %401 = vmatprep.subr.bf16.mxu0 0
    %402 = vmatpush2.bf16.xpose.msra.mxu0 0
    %403 = vmatprep.subr.bf16.mxu0 0
    %404 = vmatpush2.bf16.xpose.msra.mxu0 0
    %405 = vmatprep.subr.bf16.mxu0 0
    %406 = vmatpush2.bf16.xpose.msra.mxu0 0
    %407 = vmatprep.subr.bf16.mxu0 0
    %408 = vmatpush2.bf16.xpose.msra.mxu0 0
    %409 = vmatprep.mubr.bf16.mxu0 0
    %410 = vmatmul.mubr.bf16.gmra.mxu0 %v372
    %v411 = vpop.f32.mrf.mxu0
    %v412 = vadd.f32 %v317, %v411
    %v413 = vpop.f32.mrf.mxu0
    %v414 = vpop.f32.mrf.mxu0
    %v415 = vpop.f32.mrf.mxu0
    %416 = vdwg.mxu0
    %vm417 = vcmask 64512
    %v418 = vsel %vm417, %v363, -inf
    %419 = vmax.xlane.f32.xlu0 %v418
    %v420 = vpop.xlane.xlu0 %419
    %v421 = vsel %vm417, %v412, -inf
    %422 = vmax.xlane.f32.xlu0 %v421
    %v423 = vpop.xlane.xlu0 %422
    %v424 = vsub.f32 %v363, %v420
    %v425 = vsub.f32 %v412, %v423
    %v426 = vmul.f32 %v424, 1.442695
    %v427 = vpow.pop %v426
    %v428 = vmul.f32 %v425, 1.442695
    %v429 = vpow.pop %v428
    %v430 = vsel %vm417, %v427, 0.0
    %431 = vadd.xlane.f32.xlu0 %v430
    %v432 = vpop.xlane.xlu0 %431
    %v433 = vsel %vm417, %v429, 0.0
    %434 = vadd.xlane.f32.xlu0 %v433
    %v435 = vpop.xlane.xlu0 %434
    %v436 = vpack.c.bf16 %v427, %v427
    %v437 = vpack.c.bf16 %v429, %v429
    %438 = vrot.lane.b32.xlu0 %v310, 64
    %v439 = vpop.permute.xlu0 %438
    %v441 = vsel %vm417, %v436, 0
    %vm443 = vcmask 1043456
    %v445 = vsel %vm443, %v439, 0
    %447 = vmatprep.subr.bf16.mxu0 0
    %448 = vmatpush1.bf16.msra.mxu0 0
    %449 = vmatprep.subr.bf16.mxu0 0
    %450 = vmatpush1.bf16.msra.mxu0 0
    %451 = vmatprep.subr.bf16.mxu0 0
    %452 = vmatpush1.bf16.msra.mxu0 0
    %453 = vmatprep.subr.bf16.mxu0 0
    %454 = vmatpush1.bf16.msra.mxu0 0
    %455 = vmatprep.subr.bf16.mxu0 0
    %456 = vmatpush1.bf16.msra.mxu0 0
    %457 = vmatprep.subr.bf16.mxu0 0
    %458 = vmatpush1.bf16.msra.mxu0 0
    %459 = vmatprep.subr.bf16.mxu0 0
    %460 = vmatpush1.bf16.msra.mxu0 0
    %461 = vmatprep.subr.bf16.mxu0 0
    %462 = vmatpush1.bf16.msra.mxu0 %v445
    %463 = vmatprep.subr.bf16.mxu0 0
    %464 = vmatpush2.bf16.msra.mxu0 0
    %465 = vmatprep.subr.bf16.mxu0 0
    %466 = vmatpush2.bf16.msra.mxu0 0
    %467 = vmatprep.subr.bf16.mxu0 0
    %468 = vmatpush2.bf16.msra.mxu0 0
    %469 = vmatprep.subr.bf16.mxu0 0
    %470 = vmatpush2.bf16.msra.mxu0 0
    %471 = vmatprep.subr.bf16.mxu0 0
    %472 = vmatpush2.bf16.msra.mxu0 0
    %473 = vmatprep.subr.bf16.mxu0 0
    %474 = vmatpush2.bf16.msra.mxu0 0
    %475 = vmatprep.subr.bf16.mxu0 0
    %476 = vmatpush2.bf16.msra.mxu0 0
    %477 = vmatprep.subr.bf16.mxu0 0
    %478 = vmatpush2.bf16.msra.mxu0 0
    %479 = vmatprep.mubr.bf16.mxu0 0
    %480 = vmatmul.mubr.bf16.gmra.mxu0 %v441
    %v481 = vpop.f32.mrf.mxu0
    %v482 = vadd.f32 0.0, %v481
    %v483 = vpop.f32.mrf.mxu0
    %v484 = vpop.f32.mrf.mxu0
    %v485 = vpop.f32.mrf.mxu0
    %486 = vdwg.mxu0
    %487 = vrot.lane.b32.xlu0 %v311, 64
    %v488 = vpop.permute.xlu0 %487
    %v490 = vsel %vm417, %v437, 0
    %v493 = vsel %vm443, %v488, 0
    %495 = vmatprep.subr.bf16.mxu0 0
    %496 = vmatpush1.bf16.msra.mxu0 0
    %497 = vmatprep.subr.bf16.mxu0 0
    %498 = vmatpush1.bf16.msra.mxu0 0
    %499 = vmatprep.subr.bf16.mxu0 0
    %500 = vmatpush1.bf16.msra.mxu0 0
    %501 = vmatprep.subr.bf16.mxu0 0
    %502 = vmatpush1.bf16.msra.mxu0 0
    %503 = vmatprep.subr.bf16.mxu0 0
    %504 = vmatpush1.bf16.msra.mxu0 0
    %505 = vmatprep.subr.bf16.mxu0 0
    %506 = vmatpush1.bf16.msra.mxu0 0
    %507 = vmatprep.subr.bf16.mxu0 0
    %508 = vmatpush1.bf16.msra.mxu0 0
    %509 = vmatprep.subr.bf16.mxu0 0
    %510 = vmatpush1.bf16.msra.mxu0 %v493
    %511 = vmatprep.subr.bf16.mxu0 0
    %512 = vmatpush2.bf16.msra.mxu0 0
    %513 = vmatprep.subr.bf16.mxu0 0
    %514 = vmatpush2.bf16.msra.mxu0 0
    %515 = vmatprep.subr.bf16.mxu0 0
    %516 = vmatpush2.bf16.msra.mxu0 0
    %517 = vmatprep.subr.bf16.mxu0 0
    %518 = vmatpush2.bf16.msra.mxu0 0
    %519 = vmatprep.subr.bf16.mxu0 0
    %520 = vmatpush2.bf16.msra.mxu0 0
    %521 = vmatprep.subr.bf16.mxu0 0
    %522 = vmatpush2.bf16.msra.mxu0 0
    %523 = vmatprep.subr.bf16.mxu0 0
    %524 = vmatpush2.bf16.msra.mxu0 0
    %525 = vmatprep.subr.bf16.mxu0 0
    %526 = vmatpush2.bf16.msra.mxu0 0
    %527 = vmatprep.mubr.bf16.mxu0 0
    %528 = vmatmul.mubr.bf16.gmra.mxu0 %v490
    %v529 = vpop.f32.mrf.mxu0
    %v530 = vadd.f32 0.0, %v529
    %v531 = vpop.f32.mrf.mxu0
    %v532 = vpop.f32.mrf.mxu0
    %v533 = vpop.f32.mrf.mxu0
    %534 = vdwg.mxu0
    %v535 = vrcp.pop %v432
    %v536 = vrcp.pop %v435
    %v537 = vmul.f32 %v482, %v535
    %v538 = vmul.f32 %v530, %v536
    %539 = vst.msk [vmem:[#allocation2] sm:$0xff] %vm321, %v537
    %540 = vst.msk [vmem:[#allocation2 + $0x8] sm:$0xff] %vm321, %v538
    // Predicated region
    $region14: #{tpu_custom_call.1} parent=1 // pred_check
      _
    $region15: #{tpu_custom_call.1} parent=1 // pred_check_branch
      %542 = sbr.rel (0) target = $region17
    $region16: #{tpu_custom_call.1} parent=1 // pred_region
      %s544 = ssub.s32 256, 256
      %545 = vsyncadd [#allocation3], %s544
      %s546 = sshll.u32 [#allocation2], 4
      %s547 = int_to_ptr.vmem [resolvable:$true] %s546
      %552 = dma.vmem_to_hbm [thread:$0]  %s547, 256, %s3, [#allocation3], 128, 128, 8
    $region17: #{tpu_custom_call.1} parent=1 // pred_fallthru
      _
    // Predicated region
    $region18: #{tpu_custom_call.1} parent=1 // pred_check
      _
    $region19: #{tpu_custom_call.1} parent=1 // pred_check_branch
      %554 = sbr.rel (0) target = $region21
    $region20: #{tpu_custom_call.1} parent=1 // pred_region
      %555 = dma.done [#allocation3], 256
    $region21: #{tpu_custom_call.1} parent=1 // pred_fallthru
      _
    %556 = vsyncpa [#allocation3], 1

</llo_original>
